<compile_context>
chip_gen: v7x
topology: tpu7x:2x2x1
jax: 0.10.0
libtpu: 0.0.40
codegen_flags: <defaults>
</compile_context>

<pallas_src>
import functools

import jax
import jax.numpy as jnp
from jax.experimental import pallas as pl
from jax.experimental.pallas import tpu as pltpu


def _wce_kernel(cw_ref, y_ref, x_ref, num_ref, den_ref, *, n_rows):
    """Per tile: num = sum_i w_i * CE_i, den = sum_i w_i (invalid rows masked)."""
    i = pl.program_id(0)

    x = x_ref[...].astype(jnp.float32)          # (TN, C) upcast in-tile, not in wrapper
    y = y_ref[...]                              # (TN, 1) int32 targets (padded rows: 0)
    cw = cw_ref[...]                            # (1, C)  f32 class weights (resident)

    tn, c = x.shape
    class_ids = jax.lax.broadcasted_iota(jnp.int32, (tn, c), 1)
    mask = class_ids == y                       # (TN, C), exactly one True per real row

    # Fused per-class weight gather: w[i] = class_weights[y[i]].
    w = jnp.sum(jnp.where(mask, cw, 0.0), axis=1, keepdims=True)            # (TN, 1)

    # Numerically stable per-sample cross entropy: logsumexp(x) - x[target].
    m = jnp.max(x, axis=1, keepdims=True)                                   # (TN, 1)
    lse = jnp.log(jnp.sum(jnp.exp(x - m), axis=1, keepdims=True)) + m       # (TN, 1)
    tgt = jnp.sum(jnp.where(mask, x, 0.0), axis=1, keepdims=True)           # (TN, 1)
    loss = lse - tgt                                                        # (TN, 1)

    # Ragged-tail masking: x is NOT padded, so out-of-range rows may hold
    # arbitrary data (possibly inf/NaN).  jnp.where *selects*, so NaN in the
    # unselected branch cannot leak into the sums.
    row = jax.lax.broadcasted_iota(jnp.int32, (tn, 1), 0) + i * tn
    valid = row < n_rows
    wl = jnp.where(valid, w * loss, 0.0)
    wv = jnp.where(valid, w, 0.0)

    # Lane-dense (8, 128) partial-sum blocks: one full vreg, unmasked store.
    num_ref[...] = jnp.broadcast_to(jnp.sum(wl), num_ref.shape).astype(num_ref.dtype)
    den_ref[...] = jnp.broadcast_to(jnp.sum(wv), den_ref.shape).astype(den_ref.dtype)


def _round_up(v, m):
    return ((v + m - 1) // m) * m


def weighted_cross_entropy(x, y, class_weights, *, block_n=None):
    """x: (N, C) logits (any float dtype); y: (N,) int targets;
    class_weights: (C,) = 1/sqrt(histogram + 1).  Returns scalar loss."""
    n, c = x.shape
    itemsize = jnp.dtype(x.dtype).itemsize
    # Sublane pack: bf16 packs 2 rows/sublane (16), int8/fp8 packs 4 (32).
    pack = {1: 32, 2: 16}.get(itemsize, 8)

    if block_n is None:
        # VMEM-live bytes per batch row:
        #   2 pipeline buffers of native-dtype x : 2 * c * itemsize
        #   ~4 full-size f32 temporaries         : 16 * c
        #   lane-padded (block_n, 1) y buffers   : 2 * 128 * 4
        per_row = 2 * c * itemsize + 16 * c + 1024
        budget = 20 * 1024 * 1024      # fits v7x 32 MiB scoped / raised v5e limit
        block_n = max(pack, min(4096, budget // per_row))
        if n > 2 * pack:               # keep >= 2 grid steps so both v7x TCs get work
            block_n = min(block_n, _round_up(pl.cdiv(n, 2), pack))
    block_n = min(block_n, _round_up(n, pack))
    block_n = max(pack, (block_n // pack) * pack)

    grid_n = pl.cdiv(n, block_n)
    n_pad = grid_n * block_n

    cw2 = class_weights.astype(jnp.float32).reshape(1, c)
    y2 = y.astype(jnp.int32)
    if n_pad != n:
        y2 = jnp.pad(y2, (0, n_pad - n))   # O(N) int vector only; x stays unpadded
    y2 = y2.reshape(n_pad, 1)

    kernel = functools.partial(_wce_kernel, n_rows=n)
    num, den = pl.pallas_call(
        kernel,
        out_shape=(
            jax.ShapeDtypeStruct((grid_n * 8, 128), jnp.float32),
            jax.ShapeDtypeStruct((grid_n * 8, 128), jnp.float32),
        ),
        grid=(grid_n,),
        in_specs=[
            pl.BlockSpec((1, c), lambda i: (0, 0)),          # class weights, resident
            pl.BlockSpec((block_n, 1), lambda i: (i, 0)),    # targets
            pl.BlockSpec((block_n, c), lambda i: (i, 0)),    # logits, native dtype
        ],
        out_specs=(
            pl.BlockSpec((8, 128), lambda i: (i, 0)),        # per-tile sum(w*loss)
            pl.BlockSpec((8, 128), lambda i: (i, 0)),        # per-tile sum(w)
        ),
        compiler_params=pltpu.CompilerParams(
            dimension_semantics=("parallel",),
            vmem_limit_bytes=32 * 1024 * 1024,
        ),
    )(cw2, y2, x)

    # Tiny epilogue: one scalar per tile, then the single normalization divide.
    num = num.reshape(grid_n, 8, 128)[:, 0, 0]
    den = den.reshape(grid_n, 8, 128)[:, 0, 0]
    return jnp.sum(num) / jnp.sum(den)


class WeightedCrossEntropy:
    """Mirror of the PyTorch module: __init__ stores 1/sqrt(histogram + 1)."""

    def __init__(self, histogram):
        self.class_weights = 1.0 / jnp.sqrt(histogram.astype(jnp.float32) + 1.0)

    def __call__(self, x, y, block_n=None):
        return weighted_cross_entropy(x, y, self.class_weights, block_n=block_n)


def _reference(x, y, class_weights):
    """Pure-JAX reference mirroring the PyTorch forward."""
    xf = x.astype(jnp.float32)
    logp = jax.nn.log_softmax(xf, axis=-1)
    losses = -jnp.take_along_axis(logp, y[:, None].astype(jnp.int32), axis=-1)[:, 0]
    w = jnp.take(class_weights.astype(jnp.float32), y.astype(jnp.int32))
    w = w / jnp.sum(w)
    return jnp.sum(w * losses)


if __name__ == "__main__":
    key = jax.random.PRNGKey(0)
    kx, ky, kx2, ky2 = jax.random.split(key, 4)

    # --- small case matching the module's typical use (batch=8, 10 classes) ---
    N, C = 8, 10
    histogram = jnp.arange(1, C + 1, dtype=jnp.float32) * 5.0   # class counts
    module = WeightedCrossEntropy(histogram)

    x = jax.random.normal(kx, (N, C), dtype=jnp.float32)
    y = jax.random.randint(ky, (N,), 0, C, dtype=jnp.int32)

    loss = jax.block_until_ready(module(x, y))
    ref = _reference(x, y, module.class_weights)
    assert jnp.allclose(loss, ref, rtol=1e-5, atol=1e-5), (loss, ref)

    # --- bf16 streaming path, ragged last block (N not a multiple of the tile) ---
    N2, C2 = 300, 384
    hist2 = (jnp.arange(C2, dtype=jnp.float32) % 17.0) * 3.0 + 1.0
    module2 = WeightedCrossEntropy(hist2)
    x2 = jax.random.normal(kx2, (N2, C2), dtype=jnp.float32).astype(jnp.bfloat16)
    y2 = jax.random.randint(ky2, (N2,), 0, C2, dtype=jnp.int32)
    ref2 = _reference(x2, y2, module2.class_weights)

    # explicit small tile: grid of 5 with a masked 20-row ragged tail
    loss2 = jax.block_until_ready(module2(x2, y2, block_n=64))
    assert jnp.allclose(loss2, ref2, rtol=1e-4, atol=1e-4), (loss2, ref2)

    # auto-chosen tile: grid of 2, ragged tail masked in-kernel, no x padding
    loss3 = jax.block_until_ready(module2(x2, y2))
    assert jnp.allclose(loss3, ref2, rtol=1e-4, atol=1e-4), (loss3, ref2)

    print("KERNEL_OK")
</pallas_src>

<mosaic_0001>
module attributes {stable_mosaic.version = 11 : i64} {
  func.func @_wce_kernel(%arg0: i32, %arg1: memref<1x10xf32, #tpu.memory_space<vmem>>, %arg2: memref<8x1xi32, #tpu.memory_space<vmem>>, %arg3: memref<8x10xf32, #tpu.memory_space<vmem>>, %arg4: memref<8x128xf32, #tpu.memory_space<vmem>>, %arg5: memref<8x128xf32, #tpu.memory_space<vmem>>) attributes {dimension_semantics = [#tpu.dimension_semantics<parallel>], iteration_bounds = array<i64: 1>, scalar_prefetch = 0 : i64, scratch_operands = 0 : i64, tpu.core_type = #tpu.core_type<tc>, window_params = [{pipeline_mode = #tpu.pipeline_mode<synchronous>, transform_indices = @transform_0, window_bounds = array<i64: 1, 10>}, {transform_indices = @transform_1, window_bounds = array<i64: 8, 1>}, {transform_indices = @transform_2, window_bounds = array<i64: 8, 10>}, {transform_indices = @transform_3, window_bounds = array<i64: 8, 128>}, {transform_indices = @transform_4, window_bounds = array<i64: 8, 128>}]} {
    %c0 = arith.constant 0 : index
    %c0_0 = arith.constant 0 : index
    %0 = vector.load %arg3[%c0, %c0_0] : memref<8x10xf32, #tpu.memory_space<vmem>>, vector<8x10xf32>
    %c0_1 = arith.constant 0 : index
    %c0_2 = arith.constant 0 : index
    %1 = vector.load %arg2[%c0_1, %c0_2] : memref<8x1xi32, #tpu.memory_space<vmem>>, vector<8x1xi32>
    %c0_3 = arith.constant 0 : index
    %c0_4 = arith.constant 0 : index
    %2 = vector.load %arg1[%c0_3, %c0_4] : memref<1x10xf32, #tpu.memory_space<vmem>>, vector<1x10xf32>
    %3 = tpu.iota {dimensions = array<i32: 1>} : vector<8x10xi32>
    %4 = vector.broadcast %1 : vector<8x1xi32> to vector<8x10xi32>
    %5 = arith.cmpi eq, %3, %4 : vector<8x10xi32>
    %cst = arith.constant 0.000000e+00 : f32
    %6 = vector.shape_cast %2 : vector<1x10xf32> to vector<1x10xf32>
    %7 = vector.broadcast %6 : vector<1x10xf32> to vector<8x10xf32>
    %8 = vector.broadcast %cst : f32 to vector<8x10xf32>
    %9 = arith.select %5, %7, %8 : vector<8x10xi1>, vector<8x10xf32>
    %cst_5 = arith.constant dense<0.000000e+00> : vector<8xf32>
    %10 = vector.multi_reduction <add>, %9, %cst_5 [1] : vector<8x10xf32> to vector<8xf32>
    %11 = vector.shape_cast %10 : vector<8xf32> to vector<8x1xf32>
    %cst_6 = arith.constant dense<0xFF800000> : vector<8xf32>
    %12 = vector.multi_reduction <maximumf>, %0, %cst_6 [1] : vector<8x10xf32> to vector<8xf32>
    %13 = vector.shape_cast %12 : vector<8xf32> to vector<8x1xf32>
    %14 = vector.broadcast %13 : vector<8x1xf32> to vector<8x10xf32>
    %15 = arith.subf %0, %14 : vector<8x10xf32>
    %16 = math.exp %15 : vector<8x10xf32>
    %cst_7 = arith.constant dense<0.000000e+00> : vector<8xf32>
    %17 = vector.multi_reduction <add>, %16, %cst_7 [1] : vector<8x10xf32> to vector<8xf32>
    %18 = vector.shape_cast %17 : vector<8xf32> to vector<8x1xf32>
    %19 = math.log %18 : vector<8x1xf32>
    %20 = arith.addf %19, %13 : vector<8x1xf32>
    %cst_8 = arith.constant 0.000000e+00 : f32
    %21 = vector.broadcast %cst_8 : f32 to vector<8x10xf32>
    %22 = arith.select %5, %0, %21 : vector<8x10xi1>, vector<8x10xf32>
    %cst_9 = arith.constant dense<0.000000e+00> : vector<8xf32>
    %23 = vector.multi_reduction <add>, %22, %cst_9 [1] : vector<8x10xf32> to vector<8xf32>
    %24 = vector.shape_cast %23 : vector<8xf32> to vector<8x1xf32>
    %25 = arith.subf %20, %24 : vector<8x1xf32>
    %26 = tpu.iota {dimensions = array<i32: 0>} : vector<8x1xi32>
    %c8_i32 = arith.constant 8 : i32
    %27 = arith.muli %arg0, %c8_i32 : i32
    %28 = vector.broadcast %27 : i32 to vector<8x1xi32>
    %29 = arith.addi %26, %28 : vector<8x1xi32>
    %c8_i32_10 = arith.constant 8 : i32
    %30 = vector.broadcast %c8_i32_10 : i32 to vector<8x1xi32>
    %31 = arith.cmpi slt, %29, %30 : vector<8x1xi32>
    %32 = arith.mulf %11, %25 : vector<8x1xf32>
    %cst_11 = arith.constant 0.000000e+00 : f32
    %33 = vector.broadcast %cst_11 : f32 to vector<8x1xf32>
    %34 = arith.select %31, %32, %33 : vector<8x1xi1>, vector<8x1xf32>
    %cst_12 = arith.constant 0.000000e+00 : f32
    %35 = vector.broadcast %cst_12 : f32 to vector<8x1xf32>
    %36 = arith.select %31, %11, %35 : vector<8x1xi1>, vector<8x1xf32>
    %37 = vector.shape_cast %34 : vector<8x1xf32> to vector<1x8x1xf32>
    %cst_13 = arith.constant dense<0.000000e+00> : vector<1xf32>
    %38 = vector.multi_reduction <add>, %37, %cst_13 [1, 2] : vector<1x8x1xf32> to vector<1xf32>
    %39 = vector.shape_cast %38 : vector<1xf32> to vector<1x1x1xf32>
    %40 = vector.extract %39[0, 0, 0] : f32 from vector<1x1x1xf32>
    %41 = vector.broadcast %40 : f32 to vector<8x128xf32>
    %c0_14 = arith.constant 0 : index
    %c0_15 = arith.constant 0 : index
    %42 = vector.load %arg4[%c0_14, %c0_15] : memref<8x128xf32, #tpu.memory_space<vmem>>, vector<8x128xf32>
    tpu.vector_store %arg4[%c0_14, %c0_15], %41 {strides = array<i32>} : memref<8x128xf32, #tpu.memory_space<vmem>>, vector<8x128xf32>,
    %43 = vector.shape_cast %36 : vector<8x1xf32> to vector<1x8x1xf32>
    %cst_16 = arith.constant dense<0.000000e+00> : vector<1xf32>
    %44 = vector.multi_reduction <add>, %43, %cst_16 [1, 2] : vector<1x8x1xf32> to vector<1xf32>
    %45 = vector.shape_cast %44 : vector<1xf32> to vector<1x1x1xf32>
    %46 = vector.extract %45[0, 0, 0] : f32 from vector<1x1x1xf32>
    %47 = vector.broadcast %46 : f32 to vector<8x128xf32>
    %c0_17 = arith.constant 0 : index
    %c0_18 = arith.constant 0 : index
    %48 = vector.load %arg5[%c0_17, %c0_18] : memref<8x128xf32, #tpu.memory_space<vmem>>, vector<8x128xf32>
    tpu.vector_store %arg5[%c0_17, %c0_18], %47 {strides = array<i32>} : memref<8x128xf32, #tpu.memory_space<vmem>>, vector<8x128xf32>,
    return
  }
  func.func @transform_0(%arg0: i32) -> (i32, i32) {
    %c0_i32 = arith.constant 0 : i32
    %c0_i32_0 = arith.constant 0 : i32
    %c0_i32_1 = arith.constant 0 : i32
    return %c0_i32, %c0_i32_0 : i32, i32
  }
  func.func @transform_1(%arg0: i32) -> (i32, i32) {
    %c0_i32 = arith.constant 0 : i32
    %c0_i32_0 = arith.constant 0 : i32
    return %arg0, %c0_i32 : i32, i32
  }
  func.func @transform_2(%arg0: i32) -> (i32, i32) {
    %c0_i32 = arith.constant 0 : i32
    %c0_i32_0 = arith.constant 0 : i32
    return %arg0, %c0_i32 : i32, i32
  }
  func.func @transform_3(%arg0: i32) -> (i32, i32) {
    %c0_i32 = arith.constant 0 : i32
    %c0_i32_0 = arith.constant 0 : i32
    return %arg0, %c0_i32 : i32, i32
  }
  func.func @transform_4(%arg0: i32) -> (i32, i32) {
    %c0_i32 = arith.constant 0 : i32
    %c0_i32_0 = arith.constant 0 : i32
    return %arg0, %c0_i32 : i32, i32
  }
}

</mosaic_0001>

<llo_original>
// kernel: tpu_custom_call.1
$region0: #{tpu_custom_call.1}
  #allocation0 [shape = 'u32[]', space=smem, size = 0x4, offset = 0x4, fixed_abs, tag = 'smem constant byte address 0x4 - core index']
  #allocation1 [shape = 'u32[144,128]{1,0:T(1,128)}', space=vmem, size = 0x12000, scoped, tag = 'internal scratch']
  %s0 = inlined_call_operand.vmem [shape: f32[1,10], index: 0, kind: input, shape index: {}]
  %s1 = inlined_call_operand.vmem [shape: s32[8,1], index: 1, kind: input, shape index: {}]
  %s2 = inlined_call_operand.vmem [shape: f32[8,10], index: 2, kind: input, shape index: {}]
  %s3 = inlined_call_operand.hbm [shape: f32[8,128], index: 3, kind: output, shape index: {0}]
  %s4 = inlined_call_operand.hbm [shape: f32[8,128], index: 4, kind: output, shape index: {1}]
  %5 = xla_tuple %s3, %s4
  %s6 = sld [smem:[#allocation0]]
  $region30: #{tpu_custom_call.1} parent=0
    _
  %s8 = ssub.s32 1, %s6
  %s9 = scalar_select 0, %s8, %s6
  $region1: #{tpu_custom_call.1} parent=0
    #allocation2 [shape = 'u8[4096]{0}', space=vmem, size = 0x1000, scoped, tag = 'output window, operand 0, single buffered']
    #allocation3 [shape = 's32[1]{0}', space=sflag, size = 0x4, scoped, tag = 'scoped memory for tpu_custom_call.1']
    #allocation4 [shape = 'u8[4096]{0}', space=vmem, size = 0x1000, scoped, tag = 'output window, operand 1, single buffered']
    #allocation5 [shape = 's32[1]{0}', space=sflag, size = 0x4, scoped, tag = 'scoped memory for tpu_custom_call.1']
    %10 = vsyncpa [#allocation3], 0
    %11 = vsyncpa [#allocation5], 0
    // Predicated region
    $region2: #{tpu_custom_call.1} parent=1 // pred_check
      _
    $region3: #{tpu_custom_call.1} parent=1 // pred_check_branch
      %13 = sbr.rel (0) target = $region5
    $region4: #{tpu_custom_call.1} parent=1 // pred_region
      _
    $region5: #{tpu_custom_call.1} parent=1 // pred_fallthru
      _
    // Predicated region
    $region6: #{tpu_custom_call.1} parent=1 // pred_check
      _
    $region7: #{tpu_custom_call.1} parent=1 // pred_check_branch
      %15 = sbr.rel (0) target = $region9
    $region8: #{tpu_custom_call.1} parent=1 // pred_region
      _
    $region9: #{tpu_custom_call.1} parent=1 // pred_fallthru
      _
    // Predicated region
    $region10: #{tpu_custom_call.1} parent=1 // pred_check
      _
    $region11: #{tpu_custom_call.1} parent=1 // pred_check_branch
      %17 = sbr.rel (0) target = $region13
    $region12: #{tpu_custom_call.1} parent=1 // pred_region
      _
    $region13: #{tpu_custom_call.1} parent=1 // pred_fallthru
      _
    %v18 = vld [vmem:[%s2] sm:$0xff]
    %v19 = vld [vmem:[%s1] sm:$0xff]
    %v20 = vld [vmem:[%s0] sm:$0x1]
    %v21 = vlaneseq
    %v22 = vand.u32 %v21, 127
    %23 = vset.pattern.permute.xlu0 0
    %24 = vperm.xlu0 %23, %v19
    %v25 = vpop.permute.xlu0 %24
    %vm26 = vcmp.eq.s32.totalorder %v22, %v25
    %v28 = vlaneseq
    %v29 = vshrl.u32 %v28, 7
    %v30 = vsub.s32 0, %v29
    %v31 = vrot.slane %v20, %v30
    %v33 = vsel %vm26, %v31, 0.0
    %vm34 = vcmask 80896
    %v35 = vsel %vm34, %v33, 0.0
    %36 = vadd.xlane.f32.xlu0 %v35
    %v37 = vpop.xlane.xlu0 %36
    %v38 = vsel %vm34, %v18, -inf
    %39 = vmax.xlane.f32.xlu0 %v38
    %v40 = vpop.xlane.xlu0 %39
    %v41 = vsub.f32 %v18, %v40
    %v42 = vmul.f32 %v41, 1.442695
    %v43 = vpow.pop %v42
    %v44 = vsel %vm34, %v43, 0.0
    %45 = vadd.xlane.f32.xlu0 %v44
    %v46 = vpop.xlane.xlu0 %45
    %v47 = vlog2.pop %v46
    %v48 = vmul.f32 %v47, 0.6931472
    %v49 = vadd.f32 %v48, %v40
    %v50 = vsel %vm26, %v18, 0.0
    %v51 = vsel %vm34, %v50, 0.0
    %52 = vadd.xlane.f32.xlu0 %v51
    %v53 = vpop.xlane.xlu0 %52
    %v54 = vsub.f32 %v49, %v53
    %v55 = vlaneseq
    %v56 = vshrl.u32 %v55, 7
    %s57 = smul.u32 0, 8
    %v58 = vstv %s57
    %v59 = vadd.s32 %v56, %v58
    %vm60 = vcmp.lt.s32.totalorder %v59, 8
    %v61 = vmul.f32 %v37, %v54
    %v62 = vsel %vm60, %v61, 0.0
    %v63 = vsel %vm60, %v37, 0.0
    %vm64 = vcmask 7168
    %v65 = vsel %vm64, %v62, 0.0
    %66 = vadd.xlane.f32.xlu0 %v65
    %v67 = vpop.xlane.xlu0 %66
    %v68 = vrot.slane %v67, 4
    %v69 = vadd.f32 %v67, %v68
    %v70 = vrot.slane %v69, 2
    %v71 = vadd.f32 %v69, %v70
    %v72 = vrot.slane %v71, 1
    %v73 = vadd.f32 %v71, %v72
    %s74 = vtos %v73
    %v75 = vstv %s74
    %76 = vst [vmem:[#allocation2] sm:$0xff] %v75
    %v77 = vsel %vm64, %v63, 0.0
    %78 = vadd.xlane.f32.xlu0 %v77
    %v79 = vpop.xlane.xlu0 %78
    %v80 = vrot.slane %v79, 4
    %v81 = vadd.f32 %v79, %v80
    %v82 = vrot.slane %v81, 2
    %v83 = vadd.f32 %v81, %v82
    %v84 = vrot.slane %v83, 1
    %v85 = vadd.f32 %v83, %v84
    %s86 = vtos %v85
    %v87 = vstv %s86
    %88 = vst [vmem:[#allocation4] sm:$0xff] %v87
    // Predicated region
    $region14: #{tpu_custom_call.1} parent=1 // pred_check
      _
    $region15: #{tpu_custom_call.1} parent=1 // pred_check_branch
      %90 = sbr.rel (0) target = $region17
    $region16: #{tpu_custom_call.1} parent=1 // pred_region
      %s92 = ssub.s32 128, 128
      %93 = vsyncadd [#allocation3], %s92
      %s95 = sshll.u32 [#allocation2], 4
      %s96 = int_to_ptr.vmem [resolvable:$true] %s95
      %98 = dma.vmem_to_hbm [thread:$0]  %s96, 128, %s3, [#allocation3]
    $region17: #{tpu_custom_call.1} parent=1 // pred_fallthru
      _
    // Predicated region
    $region18: #{tpu_custom_call.1} parent=1 // pred_check
      _
    $region19: #{tpu_custom_call.1} parent=1 // pred_check_branch
      %100 = sbr.rel (0) target = $region21
    $region20: #{tpu_custom_call.1} parent=1 // pred_region
      %s102 = ssub.s32 128, 128
      %103 = vsyncadd [#allocation5], %s102
      %s105 = sshll.u32 [#allocation4], 4
      %s106 = int_to_ptr.vmem [resolvable:$true] %s105
      %108 = dma.vmem_to_hbm [thread:$0]  %s106, 128, %s4, [#allocation5]
    $region21: #{tpu_custom_call.1} parent=1 // pred_fallthru
      _
    // Predicated region
    $region22: #{tpu_custom_call.1} parent=1 // pred_check
      _
    $region23: #{tpu_custom_call.1} parent=1 // pred_check_branch
      %110 = sbr.rel (0) target = $region25
    $region24: #{tpu_custom_call.1} parent=1 // pred_region
      %111 = dma.done [#allocation3], 128
    $region25: #{tpu_custom_call.1} parent=1 // pred_fallthru
      _
    // Predicated region
    $region26: #{tpu_custom_call.1} parent=1 // pred_check
      _
    $region27: #{tpu_custom_call.1} parent=1 // pred_check_branch
      %113 = sbr.rel (0) target = $region29
    $region28: #{tpu_custom_call.1} parent=1 // pred_region
      %114 = dma.done [#allocation5], 128
    $region29: #{tpu_custom_call.1} parent=1 // pred_fallthru
      _
    %115 = vsyncpa [#allocation3], 1
    %116 = vsyncpa [#allocation5], 1

</llo_original>
